<compile_context>
chip_gen: v7x
topology: tpu7x:2x2x1
jax: 0.10.0
libtpu: 0.0.40
codegen_flags: <defaults>
</compile_context>

<pallas_src>
import jax
import jax.numpy as jnp
from jax.experimental import pallas as pl
from jax.experimental.pallas import tpu as pltpu


def _round_up(x, m):
    return (x + m - 1) // m * m


def _vmem_capacity_bytes():
    try:
        return int(pltpu.get_tpu_info().vmem_capacity_bytes)
    except Exception:
        return 64 * 1024 * 1024   # conservative fallback (v7x per-TC VMEM)


def _attention_kernel(ws_ref, rb_ref, ss_ref, b_ref, x_ref, o_ref):
    # ws_ref : (M*H, M)   VMEM, block-diagonal scoring weights   (resident)
    # rb_ref : (M, M*H)   VMEM, 0/1 "broadcast across H lanes"   (resident)
    # ss_ref : (M*H, H)   VMEM, 0/1 "sum over messages"          (resident)
    # b_ref  : (1,)       SMEM, linear bias
    # x_ref  : (tn, M*H)  VMEM, lane-folded mailbox tile (native dtype)
    # o_ref  : (tn, H)    VMEM, output tile
    x = x_ref[...]                                                    # (tn, M*H)
    b = b_ref[0]

    # scores[n, m] = <h[n, m, :], w> + b : one MXU matmul, f32 accumulation.
    scores = jnp.dot(x, ws_ref[...],
                     preferred_element_type=jnp.float32) + b          # (tn, M)

    # Numerically-stable softmax pieces; normalization is deferred to the end.
    mx = jnp.max(scores, axis=1, keepdims=True)                       # (tn, 1)
    e = jnp.exp(scores - mx)                                          # (tn, M)
    denom = jnp.sum(e, axis=1, keepdims=True)                         # (tn, 1)

    # e_b[n, m*H + j] = e[n, m] : lane broadcast done on the idle MXU.
    e_b = jnp.dot(e, rb_ref[...],
                  preferred_element_type=jnp.float32)                 # (tn, M*H)

    # acc[n, j] = sum_m e[n, m] * h[n, m, j] : one VPU multiply + one MXU matmul.
    xw = x.astype(jnp.float32) * e_b                                  # (tn, M*H) f32
    acc = jnp.dot(xw, ss_ref[...],
                  preferred_element_type=jnp.float32)                 # (tn, H)

    # Deferred normalization; exact reciprocal for parity with torch.softmax.
    # Out-of-bounds rows in a ragged last tile may turn into garbage/NaN here,
    # but all row-wise math is independent and those rows are masked on writeback.
    inv = pl.reciprocal(denom, approx=False)
    o_ref[...] = (acc * inv).astype(o_ref.dtype)


def _choose_tile_n(N, M, H, in_itemsize, out_itemsize, vmem_cap):
    """VMEM-budgeted node-tile size (multiple of 8), dtype-aware accounting."""
    budget = vmem_cap // 3                  # ~42 MiB on 128 MiB parts, ~21 MiB on v7x
    mh_p = _round_up(M * H, 128)            # lane-folded mailbox row (lane padding)
    m_p = _round_up(M, 128)
    h_p = _round_up(H, 128)

    # Resident helper matrices (padded to (8,128) tiles).
    resident = (_round_up(M * H, 8) * m_p * in_itemsize     # W_score
                + _round_up(M, 8) * mh_p * 4                # broadcast matrix (f32)
                + _round_up(M * H, 8) * h_p * 4)            # message-sum matrix (f32)

    # Per node-row bytes; f32 temporaries counted at 4 B regardless of input dtype.
    per_row = (2 * mh_p * in_itemsize       # double-buffered mailbox block
               + 3 * mh_p * 4               # f32 temps: x cast, e broadcast, weighted msgs
               + 4 * m_p * 4                # scores / max / exp / denom (lane padded)
               + h_p * 4                    # f32 accumulator
               + 2 * h_p * out_itemsize)    # double-buffered output block

    avail = max(budget - resident, 2 * 1024 * 1024)
    tile = max(8, (avail // per_row) // 8 * 8)
    # Keep >= ~4 grid steps so v7x's two TensorCores and the DMA pipeline have work.
    tile = min(tile, max(8, _round_up((N + 3) // 4, 8)))
    tile = min(tile, 4096)
    tile = min(tile, _round_up(N, 8))
    return tile


def attention_forward(h, weight, bias, *, tile_n=None):
    """h: (N, M, H); weight: (1, H); bias: (1,) -> (N, H) softmax-pooled messages."""
    N, M, H = h.shape
    MH = M * H
    dt = h.dtype
    itemsize = jnp.dtype(dt).itemsize
    vmem_cap = _vmem_capacity_bytes()

    if tile_n is None:
        tile_n = _choose_tile_n(N, M, H, itemsize, itemsize, vmem_cap)
    tile_n = max(8, (tile_n // 8) * 8)
    tile_n = min(tile_n, _round_up(N, 8))

    # Lane-folded mailbox view (free contiguous reshape): keeps the VMEM tile
    # lane-dense when H < 128 instead of padding lanes up to 128.
    h2 = h.reshape(N, MH)

    # Tiny resident matrices that turn scoring / broadcast / message-sum into matmuls.
    w_vec = weight.reshape(-1).astype(jnp.float32)                    # (H,)
    eye_m = jnp.eye(M, dtype=jnp.float32)
    w_score = (eye_m[:, None, :] * w_vec[None, :, None]).reshape(MH, M).astype(dt)
    r_bcast = jnp.repeat(eye_m, H, axis=1)                            # (M, MH) f32
    s_sum = jnp.tile(jnp.eye(H, dtype=jnp.float32), (M, 1))           # (MH, H) f32

    bias_smem = bias.reshape(1).astype(jnp.float32)

    # Ragged last node tile handled by Pallas boundary masking (cdiv grid).
    grid = (pl.cdiv(N, tile_n),)

    # TODO(synk): output last dim H=32 < 128 still uses masked partial stores; store
    # traffic is M× smaller than the (now lane-dense) load path so it is not packed.
    return pl.pallas_call(
        _attention_kernel,
        out_shape=jax.ShapeDtypeStruct((N, H), dt),
        grid_spec=pltpu.PrefetchScalarGridSpec(
            num_scalar_prefetch=0,
            grid=grid,
            in_specs=[
                pl.BlockSpec((MH, M), lambda i: (0, 0)),              # scoring weights (resident)
                pl.BlockSpec((M, MH), lambda i: (0, 0)),              # broadcast matrix (resident)
                pl.BlockSpec((MH, H), lambda i: (0, 0)),              # message-sum matrix (resident)
                pl.BlockSpec(memory_space=pltpu.MemorySpace.SMEM),    # bias scalar
                pl.BlockSpec((tile_n, MH), lambda i: (i, 0)),         # lane-folded mailbox tile
            ],
            out_specs=pl.BlockSpec((tile_n, H), lambda i: (i, 0)),
        ),
        compiler_params=pltpu.CompilerParams(
            # independent node tiles -> megacore sharding on v7x, harmless elsewhere
            dimension_semantics=("parallel",),
            vmem_limit_bytes=int(min(vmem_cap * 3 // 4, 112 * 1024 * 1024)),
        ),
    )(w_score, r_bcast, s_sum, bias_smem, h2)


def _reference(h, weight, bias):
    scores = jnp.einsum("nmh,kh->nm", h, weight,
                        precision=jax.lax.Precision.HIGHEST) + bias[0]
    attn = jax.nn.softmax(scores, axis=1)
    return jnp.sum(attn[..., None] * h, axis=1)


if __name__ == "__main__":
    key = jax.random.PRNGKey(0)
    k_h, k_w, k_b = jax.random.split(key, 3)

    N, M, H = 8, 8, 32          # nodes, mailbox size (messages per node), hidden_dim
    h = jax.random.normal(k_h, (N, M, H), dtype=jnp.float32)

    # Deterministic nn.Linear(hidden_dim, 1) parameters (uniform like PyTorch default)
    bound = 1.0 / (H ** 0.5)
    weight = jax.random.uniform(k_w, (1, H), jnp.float32, -bound, bound)
    bias = jax.random.uniform(k_b, (1,), jnp.float32, -bound, bound)

    out = attention_forward(h, weight, bias)
    out = jax.block_until_ready(out)

    ref = _reference(h, weight, bias)
    assert out.shape == (N, H)
    # Tolerance covers the MXU f32 matmul path across TPU generations (which may
    # internally use bf16 passes); structural/algorithmic errors would be O(0.1-1).
    assert jnp.allclose(out, ref, atol=1e-2, rtol=1e-2), "mismatch vs reference"

    print("KERNEL_OK")
</pallas_src>

<mosaic_0001>
module attributes {stable_mosaic.version = 11 : i64} {
  func.func @_attention_kernel(%arg0: i32, %arg1: memref<256x8xf32, #tpu.memory_space<vmem>>, %arg2: memref<8x256xf32, #tpu.memory_space<vmem>>, %arg3: memref<256x32xf32, #tpu.memory_space<vmem>>, %arg4: memref<1xf32, #tpu.memory_space<smem>>, %arg5: memref<8x256xf32, #tpu.memory_space<vmem>>, %arg6: memref<8x32xf32, #tpu.memory_space<vmem>>) attributes {dimension_semantics = [#tpu.dimension_semantics<parallel>], iteration_bounds = array<i64: 1>, scalar_prefetch = 0 : i64, scratch_operands = 0 : i64, tpu.core_type = #tpu.core_type<tc>, window_params = [{pipeline_mode = #tpu.pipeline_mode<synchronous>, transform_indices = @transform_0, window_bounds = array<i64: 256, 8>}, {pipeline_mode = #tpu.pipeline_mode<synchronous>, transform_indices = @transform_1, window_bounds = array<i64: 8, 256>}, {pipeline_mode = #tpu.pipeline_mode<synchronous>, transform_indices = @transform_2, window_bounds = array<i64: 256, 32>}, {transform_indices = @transform_3, window_bounds = array<i64: 1>}, {transform_indices = @transform_4, window_bounds = array<i64: 8, 256>}, {transform_indices = @transform_5, window_bounds = array<i64: 8, 32>}]} {
    %c0 = arith.constant 0 : index
    %c0_0 = arith.constant 0 : index
    %0 = vector.load %arg5[%c0, %c0_0] : memref<8x256xf32, #tpu.memory_space<vmem>>, vector<8x256xf32>
    %c0_1 = arith.constant 0 : index
    %1 = memref.load %arg4[%c0_1] : memref<1xf32, #tpu.memory_space<smem>>
    %c0_2 = arith.constant 0 : index
    %c0_3 = arith.constant 0 : index
    %2 = vector.load %arg1[%c0_2, %c0_3] : memref<256x8xf32, #tpu.memory_space<vmem>>, vector<256x8xf32>
    %cst = arith.constant dense<0.000000e+00> : vector<8x8xf32>
    %3 = tpu.matmul %0, %2, %cst {dimension_numbers = #tpu.dot_dimension_numbers<[1], [0], [0], [1], [0, 0, 1, 1], [], []>} : vector<8x256xf32>, vector<256x8xf32>, vector<8x8xf32> -> vector<8x8xf32>
    %4 = vector.broadcast %1 : f32 to vector<8x8xf32>
    %5 = arith.addf %3, %4 : vector<8x8xf32>
    %cst_4 = arith.constant dense<0xFF800000> : vector<8xf32>
    %6 = vector.multi_reduction <maximumf>, %5, %cst_4 [1] : vector<8x8xf32> to vector<8xf32>
    %7 = vector.shape_cast %6 : vector<8xf32> to vector<8x1xf32>
    %8 = vector.broadcast %7 : vector<8x1xf32> to vector<8x8xf32>
    %9 = arith.subf %5, %8 : vector<8x8xf32>
    %10 = math.exp %9 : vector<8x8xf32>
    %cst_5 = arith.constant dense<0.000000e+00> : vector<8xf32>
    %11 = vector.multi_reduction <add>, %10, %cst_5 [1] : vector<8x8xf32> to vector<8xf32>
    %12 = vector.shape_cast %11 : vector<8xf32> to vector<8x1xf32>
    %c0_6 = arith.constant 0 : index
    %c0_7 = arith.constant 0 : index
    %13 = vector.load %arg2[%c0_6, %c0_7] : memref<8x256xf32, #tpu.memory_space<vmem>>, vector<8x256xf32>
    %cst_8 = arith.constant dense<0.000000e+00> : vector<8x256xf32>
    %14 = tpu.matmul %10, %13, %cst_8 {dimension_numbers = #tpu.dot_dimension_numbers<[1], [0], [0], [1], [0, 0, 1, 1], [], []>} : vector<8x8xf32>, vector<8x256xf32>, vector<8x256xf32> -> vector<8x256xf32>
    %15 = arith.mulf %0, %14 : vector<8x256xf32>
    %c0_9 = arith.constant 0 : index
    %c0_10 = arith.constant 0 : index
    %16 = vector.load %arg3[%c0_9, %c0_10] : memref<256x32xf32, #tpu.memory_space<vmem>>, vector<256x32xf32>
    %cst_11 = arith.constant dense<0.000000e+00> : vector<8x32xf32>
    %17 = tpu.matmul %15, %16, %cst_11 {dimension_numbers = #tpu.dot_dimension_numbers<[1], [0], [0], [1], [0, 0, 1, 1], [], []>} : vector<8x256xf32>, vector<256x32xf32>, vector<8x32xf32> -> vector<8x32xf32>
    %18 = tpu.reciprocal %12 : vector<8x1xf32> -> vector<8x1xf32>
    %19 = vector.broadcast %18 : vector<8x1xf32> to vector<8x32xf32>
    %20 = arith.mulf %17, %19 : vector<8x32xf32>
    %c0_12 = arith.constant 0 : index
    %c0_13 = arith.constant 0 : index
    %21 = vector.load %arg6[%c0_12, %c0_13] : memref<8x32xf32, #tpu.memory_space<vmem>>, vector<8x32xf32>
    tpu.vector_store %arg6[%c0_12, %c0_13], %20 {strides = array<i32>} : memref<8x32xf32, #tpu.memory_space<vmem>>, vector<8x32xf32>,
    return
  }
  func.func @transform_0(%arg0: i32) -> (i32, i32) {
    %c0_i32 = arith.constant 0 : i32
    %c0_i32_0 = arith.constant 0 : i32
    %c0_i32_1 = arith.constant 0 : i32
    return %c0_i32, %c0_i32_0 : i32, i32
  }
  func.func @transform_1(%arg0: i32) -> (i32, i32) {
    %c0_i32 = arith.constant 0 : i32
    %c0_i32_0 = arith.constant 0 : i32
    %c0_i32_1 = arith.constant 0 : i32
    return %c0_i32, %c0_i32_0 : i32, i32
  }
  func.func @transform_2(%arg0: i32) -> (i32, i32) {
    %c0_i32 = arith.constant 0 : i32
    %c0_i32_0 = arith.constant 0 : i32
    %c0_i32_1 = arith.constant 0 : i32
    return %c0_i32, %c0_i32_0 : i32, i32
  }
  func.func @transform_3(%arg0: i32) -> i32 {
    %c0_i32 = arith.constant 0 : i32
    %c0_i32_0 = arith.constant 0 : i32
    return %c0_i32 : i32
  }
  func.func @transform_4(%arg0: i32) -> (i32, i32) {
    %c0_i32 = arith.constant 0 : i32
    %c0_i32_0 = arith.constant 0 : i32
    return %arg0, %c0_i32 : i32, i32
  }
  func.func @transform_5(%arg0: i32) -> (i32, i32) {
    %c0_i32 = arith.constant 0 : i32
    %c0_i32_0 = arith.constant 0 : i32
    return %arg0, %c0_i32 : i32, i32
  }
}

</mosaic_0001>

<llo_original>
// kernel: tpu_custom_call.1
$region0: #{tpu_custom_call.1}
  #allocation0 [shape = 'u32[]', space=smem, size = 0x4, offset = 0x4, fixed_abs, tag = 'smem constant byte address 0x4 - core index']
  #allocation1 [shape = 'u32[144,128]{1,0:T(1,128)}', space=vmem, size = 0x12000, scoped, tag = 'internal scratch']
  #allocation2 [shape = 'f32[1]{0:T(128)S(6)}', space=smem, size = 0x200, scoped, tag = 'scoped memory for tpu_custom_call.1']
  %s0 = inlined_call_operand.vmem [shape: f32[256,8], index: 0, kind: input, shape index: {}]
  %s1 = inlined_call_operand.vmem [shape: f32[8,256], index: 1, kind: input, shape index: {}]
  %s2 = inlined_call_operand.vmem [shape: f32[256,32], index: 2, kind: input, shape index: {}]
  %s3 = inlined_call_operand.<no memory space> [shape: f32[1], index: 3, kind: input, shape index: {}]
  %s4 = inlined_call_operand.vmem [shape: f32[8,256], index: 4, kind: input, shape index: {}]
  %s5 = inlined_call_operand.hbm [shape: f32[8,32], index: 5, kind: output, shape index: {}]
  %s6 = sld [smem:[#allocation0]]
  $region30: #{tpu_custom_call.1} parent=0
    _
  %s8 = ssub.s32 1, %s6
  %s9 = scalar_select 0, %s8, %s6
  %10 = sst [smem:[#allocation2]] %s3
  $region1: #{tpu_custom_call.1} parent=0
    #allocation3 [shape = 'u8[4096]{0}', space=vmem, size = 0x1000, scoped, tag = 'output window, operand 0, single buffered']
    #allocation4 [shape = 's32[1]{0}', space=sflag, size = 0x4, scoped, tag = 'scoped memory for tpu_custom_call.1']
    %11 = vsyncpa [#allocation4], 0
    // Predicated region
    $region2: #{tpu_custom_call.1} parent=1 // pred_check
      _
    $region3: #{tpu_custom_call.1} parent=1 // pred_check_branch
      %13 = sbr.rel (0) target = $region5
    $region4: #{tpu_custom_call.1} parent=1 // pred_region
      _
    $region5: #{tpu_custom_call.1} parent=1 // pred_fallthru
      _
    // Predicated region
    $region6: #{tpu_custom_call.1} parent=1 // pred_check
      _
    $region7: #{tpu_custom_call.1} parent=1 // pred_check_branch
      %15 = sbr.rel (0) target = $region9
    $region8: #{tpu_custom_call.1} parent=1 // pred_region
      _
    $region9: #{tpu_custom_call.1} parent=1 // pred_fallthru
      _
    // Predicated region
    $region10: #{tpu_custom_call.1} parent=1 // pred_check
      _
    $region11: #{tpu_custom_call.1} parent=1 // pred_check_branch
      %17 = sbr.rel (0) target = $region13
    $region12: #{tpu_custom_call.1} parent=1 // pred_region
      _
    $region13: #{tpu_custom_call.1} parent=1 // pred_fallthru
      _
    // Predicated region
    $region14: #{tpu_custom_call.1} parent=1 // pred_check
      _
    $region15: #{tpu_custom_call.1} parent=1 // pred_check_branch
      %19 = sbr.rel (0) target = $region17
    $region16: #{tpu_custom_call.1} parent=1 // pred_region
      _
    $region17: #{tpu_custom_call.1} parent=1 // pred_fallthru
      _
    // Predicated region
    $region18: #{tpu_custom_call.1} parent=1 // pred_check
      _
    $region19: #{tpu_custom_call.1} parent=1 // pred_check_branch
      %21 = sbr.rel (0) target = $region21
    $region20: #{tpu_custom_call.1} parent=1 // pred_region
      _
    $region21: #{tpu_custom_call.1} parent=1 // pred_fallthru
      _
    %v22 = vld [vmem:[%s4] sm:$0xff]
    %v23 = vld [vmem:[%s4 + $0x8] sm:$0xff]
    %s24 = sld [smem:[#allocation2]]
    %v25 = vld [vmem:[%s0] sm:$0xff]
    %v26 = vld [vmem:[%s0 + $0x8] sm:$0xff]
    %v27 = vld [vmem:[%s0 + $0x10] sm:$0xff]
    %v28 = vld [vmem:[%s0 + $0x18] sm:$0xff]
    %v29 = vld [vmem:[%s0 + $0x20] sm:$0xff]
    %v30 = vld [vmem:[%s0 + $0x28] sm:$0xff]
    %v31 = vld [vmem:[%s0 + $0x30] sm:$0xff]
    %v32 = vld [vmem:[%s0 + $0x38] sm:$0xff]
    %v33 = vld [vmem:[%s0 + $0x40] sm:$0xff]
    %v34 = vld [vmem:[%s0 + $0x48] sm:$0xff]
    %v35 = vld [vmem:[%s0 + $0x50] sm:$0xff]
    %v36 = vld [vmem:[%s0 + $0x58] sm:$0xff]
    %v37 = vld [vmem:[%s0 + $0x60] sm:$0xff]
    %v38 = vld [vmem:[%s0 + $0x68] sm:$0xff]
    %v39 = vld [vmem:[%s0 + $0x70] sm:$0xff]
    %v40 = vld [vmem:[%s0 + $0x78] sm:$0xff]
    %v41 = vld [vmem:[%s0 + $0x80] sm:$0xff]
    %v42 = vld [vmem:[%s0 + $0x88] sm:$0xff]
    %v43 = vld [vmem:[%s0 + $0x90] sm:$0xff]
    %v44 = vld [vmem:[%s0 + $0x98] sm:$0xff]
    %v45 = vld [vmem:[%s0 + $0xa0] sm:$0xff]
    %v46 = vld [vmem:[%s0 + $0xa8] sm:$0xff]
    %v47 = vld [vmem:[%s0 + $0xb0] sm:$0xff]
    %v48 = vld [vmem:[%s0 + $0xb8] sm:$0xff]
    %v49 = vld [vmem:[%s0 + $0xc0] sm:$0xff]
    %v50 = vld [vmem:[%s0 + $0xc8] sm:$0xff]
    %v51 = vld [vmem:[%s0 + $0xd0] sm:$0xff]
    %v52 = vld [vmem:[%s0 + $0xd8] sm:$0xff]
    %v53 = vld [vmem:[%s0 + $0xe0] sm:$0xff]
    %v54 = vld [vmem:[%s0 + $0xe8] sm:$0xff]
    %v55 = vld [vmem:[%s0 + $0xf0] sm:$0xff]
    %v56 = vld [vmem:[%s0 + $0xf8] sm:$0xff]
    %v57 = vstv %s24
    %58 = vmatprep.subr.mxu0 0.0
    %59 = vmatpush1.msra.mxu0 %v25
    %60 = vmatprep.subr.mxu0 0.0
    %61 = vmatpush1.msra.mxu0 %v26
    %62 = vmatprep.subr.mxu0 0.0
    %63 = vmatpush1.msra.mxu0 %v27
    %64 = vmatprep.subr.mxu0 0.0
    %65 = vmatpush1.msra.mxu0 %v28
    %66 = vmatprep.subr.mxu0 0.0
    %67 = vmatpush1.msra.mxu0 %v29
    %68 = vmatprep.subr.mxu0 0.0
    %69 = vmatpush1.msra.mxu0 %v30
    %70 = vmatprep.subr.mxu0 0.0
    %71 = vmatpush1.msra.mxu0 %v31
    %72 = vmatprep.subr.mxu0 0.0
    %73 = vmatpush1.msra.mxu0 %v32
    %74 = vmatprep.subr.mxu0 0.0
    %75 = vmatpush1.msra.mxu0 %v33
    %76 = vmatprep.subr.mxu0 0.0
    %77 = vmatpush1.msra.mxu0 %v34
    %78 = vmatprep.subr.mxu0 0.0
    %79 = vmatpush1.msra.mxu0 %v35
    %80 = vmatprep.subr.mxu0 0.0
    %81 = vmatpush1.msra.mxu0 %v36
    %82 = vmatprep.subr.mxu0 0.0
    %83 = vmatpush1.msra.mxu0 %v37
    %84 = vmatprep.subr.mxu0 0.0
    %85 = vmatpush1.msra.mxu0 %v38
    %86 = vmatprep.subr.mxu0 0.0
    %87 = vmatpush1.msra.mxu0 %v39
    %88 = vmatprep.subr.mxu0 0.0
    %89 = vmatpush1.msra.mxu0 %v40
    %90 = vmatprep.subr.mxu0 0.0
    %91 = vmatpush1.msra.mxu0 %v41
    %92 = vmatprep.subr.mxu0 0.0
    %93 = vmatpush1.msra.mxu0 %v42
    %94 = vmatprep.subr.mxu0 0.0
    %95 = vmatpush1.msra.mxu0 %v43
    %96 = vmatprep.subr.mxu0 0.0
    %97 = vmatpush1.msra.mxu0 %v44
    %98 = vmatprep.subr.mxu0 0.0
    %99 = vmatpush1.msra.mxu0 %v45
    %100 = vmatprep.subr.mxu0 0.0
    %101 = vmatpush1.msra.mxu0 %v46
    %102 = vmatprep.subr.mxu0 0.0
    %103 = vmatpush1.msra.mxu0 %v47
    %104 = vmatprep.subr.mxu0 0.0
    %105 = vmatpush1.msra.mxu0 %v48
    %106 = vmatprep.subr.mxu0 0.0
    %107 = vmatpush1.msra.mxu0 %v49
    %108 = vmatprep.subr.mxu0 0.0
    %109 = vmatpush1.msra.mxu0 %v50
    %110 = vmatprep.subr.mxu0 0.0
    %111 = vmatpush1.msra.mxu0 %v51
    %112 = vmatprep.subr.mxu0 0.0
    %113 = vmatpush1.msra.mxu0 %v52
    %114 = vmatprep.subr.mxu0 0.0
    %115 = vmatpush1.msra.mxu0 %v53
    %116 = vmatprep.subr.mxu0 0.0
    %117 = vmatpush1.msra.mxu0 %v54
    %118 = vmatprep.subr.mxu0 0.0
    %119 = vmatpush1.msra.mxu0 %v55
    %120 = vmatprep.subr.mxu0 0.0
    %121 = vmatpush1.msra.mxu0 %v56
    %122 = vmatprep.mubr.f32.mxu0 %v23
    %123 = vmatmul.mubr.f32.gmra.mrb[0].mxu0 %v22
    %v124 = vpop.f32.mrb[0].mxu0
    %v125 = vadd.f32 %v57, %v124
    %v126 = vpop.f32.mrb[0].mxu0
    %127 = vdwg.mxu0
    %vm128 = vcmask 64512
    %v129 = vsel %vm128, %v125, -inf
    %130 = vmax.xlane.f32.xlu0 %v129
    %v131 = vpop.xlane.xlu0 %130
    %v132 = vsub.f32 %v125, %v131
    %v133 = vmul.f32 %v132, 1.442695
    %v134 = vpow.pop %v133
    %v135 = vsel %vm128, %v134, 0.0
    %136 = vadd.xlane.f32.xlu0 %v135
    %v137 = vpop.xlane.xlu0 %136
    %v138 = vld [vmem:[%s1] sm:$0xff]
    %v139 = vld [vmem:[%s1 + $0x8] sm:$0xff]
    %v141 = vsel %vm128, %v134, 0
    %143 = vmatprep.subr.mxu0 %v139
    %144 = vmatpush1.msra.mxu0 %v138
    %145 = vmatprep.subr.mxu0 0.0
    %146 = vmatpush1.msra.mxu0 0.0
    %147 = vmatprep.subr.mxu0 0.0
    %148 = vmatpush1.msra.mxu0 0.0
    %149 = vmatprep.subr.mxu0 0.0
    %150 = vmatpush1.msra.mxu0 0.0
    %151 = vmatprep.subr.mxu0 0.0
    %152 = vmatpush1.msra.mxu0 0.0
    %153 = vmatprep.subr.mxu0 0.0
    %154 = vmatpush1.msra.mxu0 0.0
    %155 = vmatprep.subr.mxu0 0.0
    %156 = vmatpush1.msra.mxu0 0.0
    %157 = vmatprep.subr.mxu0 0.0
    %158 = vmatpush1.msra.mxu0 0.0
    %159 = vmatprep.subr.mxu0 0.0
    %160 = vmatpush1.msra.mxu0 0.0
    %161 = vmatprep.subr.mxu0 0.0
    %162 = vmatpush1.msra.mxu0 0.0
    %163 = vmatprep.subr.mxu0 0.0
    %164 = vmatpush1.msra.mxu0 0.0
    %165 = vmatprep.subr.mxu0 0.0
    %166 = vmatpush1.msra.mxu0 0.0
    %167 = vmatprep.subr.mxu0 0.0
    %168 = vmatpush1.msra.mxu0 0.0
    %169 = vmatprep.subr.mxu0 0.0
    %170 = vmatpush1.msra.mxu0 0.0
    %171 = vmatprep.subr.mxu0 0.0
    %172 = vmatpush1.msra.mxu0 0.0
    %173 = vmatprep.subr.mxu0 0.0
    %174 = vmatpush1.msra.mxu0 0.0
    %175 = vmatprep.subr.mxu0 0.0
    %176 = vmatpush1.msra.mxu0 0.0
    %177 = vmatprep.subr.mxu0 0.0
    %178 = vmatpush1.msra.mxu0 0.0
    %179 = vmatprep.subr.mxu0 0.0
    %180 = vmatpush1.msra.mxu0 0.0
    %181 = vmatprep.subr.mxu0 0.0
    %182 = vmatpush1.msra.mxu0 0.0
    %183 = vmatprep.subr.mxu0 0.0
    %184 = vmatpush1.msra.mxu0 0.0
    %185 = vmatprep.subr.mxu0 0.0
    %186 = vmatpush1.msra.mxu0 0.0
    %187 = vmatprep.subr.mxu0 0.0
    %188 = vmatpush1.msra.mxu0 0.0
    %189 = vmatprep.subr.mxu0 0.0
    %190 = vmatpush1.msra.mxu0 0.0
    %191 = vmatprep.subr.mxu0 0.0
    %192 = vmatpush1.msra.mxu0 0.0
    %193 = vmatprep.subr.mxu0 0.0
    %194 = vmatpush1.msra.mxu0 0.0
    %195 = vmatprep.subr.mxu0 0.0
    %196 = vmatpush1.msra.mxu0 0.0
    %197 = vmatprep.subr.mxu0 0.0
    %198 = vmatpush1.msra.mxu0 0.0
    %199 = vmatprep.subr.mxu0 0.0
    %200 = vmatpush1.msra.mxu0 0.0
    %201 = vmatprep.subr.mxu0 0.0
    %202 = vmatpush1.msra.mxu0 0.0
    %203 = vmatprep.subr.mxu0 0.0
    %204 = vmatpush1.msra.mxu0 0.0
    %205 = vmatprep.subr.mxu0 0.0
    %206 = vmatpush1.msra.mxu0 0.0
    %207 = vmatprep.mubr.f32.mxu0 0.0
    %208 = vmatmul.mubr.f32.gmra.mrb[0].mxu0 %v141
    %v209 = vpop.f32.mrb[0].mxu0
    %v210 = vadd.f32 0.0, %v209
    %v211 = vpop.f32.mrb[0].mxu0
    %v212 = vadd.f32 0.0, %v211
    %213 = vdwg.mxu0
    %v214 = vmul.f32 %v22, %v210
    %v215 = vmul.f32 %v23, %v212
    %v216 = vld [vmem:[%s2] sm:$0xff]
    %v217 = vld [vmem:[%s2 + $0x8] sm:$0xff]
    %v218 = vld [vmem:[%s2 + $0x10] sm:$0xff]
    %v219 = vld [vmem:[%s2 + $0x18] sm:$0xff]
    %v220 = vld [vmem:[%s2 + $0x20] sm:$0xff]
    %v221 = vld [vmem:[%s2 + $0x28] sm:$0xff]
    %v222 = vld [vmem:[%s2 + $0x30] sm:$0xff]
    %v223 = vld [vmem:[%s2 + $0x38] sm:$0xff]
    %v224 = vld [vmem:[%s2 + $0x40] sm:$0xff]
    %v225 = vld [vmem:[%s2 + $0x48] sm:$0xff]
    %v226 = vld [vmem:[%s2 + $0x50] sm:$0xff]
    %v227 = vld [vmem:[%s2 + $0x58] sm:$0xff]
    %v228 = vld [vmem:[%s2 + $0x60] sm:$0xff]
    %v229 = vld [vmem:[%s2 + $0x68] sm:$0xff]
    %v230 = vld [vmem:[%s2 + $0x70] sm:$0xff]
    %v231 = vld [vmem:[%s2 + $0x78] sm:$0xff]
    %v232 = vld [vmem:[%s2 + $0x80] sm:$0xff]
    %v233 = vld [vmem:[%s2 + $0x88] sm:$0xff]
    %v234 = vld [vmem:[%s2 + $0x90] sm:$0xff]
    %v235 = vld [vmem:[%s2 + $0x98] sm:$0xff]
    %v236 = vld [vmem:[%s2 + $0xa0] sm:$0xff]
    %v237 = vld [vmem:[%s2 + $0xa8] sm:$0xff]
    %v238 = vld [vmem:[%s2 + $0xb0] sm:$0xff]
    %v239 = vld [vmem:[%s2 + $0xb8] sm:$0xff]
    %v240 = vld [vmem:[%s2 + $0xc0] sm:$0xff]
    %v241 = vld [vmem:[%s2 + $0xc8] sm:$0xff]
    %v242 = vld [vmem:[%s2 + $0xd0] sm:$0xff]
    %v243 = vld [vmem:[%s2 + $0xd8] sm:$0xff]
    %v244 = vld [vmem:[%s2 + $0xe0] sm:$0xff]
    %v245 = vld [vmem:[%s2 + $0xe8] sm:$0xff]
    %v246 = vld [vmem:[%s2 + $0xf0] sm:$0xff]
    %v247 = vld [vmem:[%s2 + $0xf8] sm:$0xff]
    %248 = vmatprep.subr.mxu0 0.0
    %249 = vmatpush1.msra.mxu0 %v216
    %250 = vmatprep.subr.mxu0 0.0
    %251 = vmatpush1.msra.mxu0 %v217
    %252 = vmatprep.subr.mxu0 0.0
    %253 = vmatpush1.msra.mxu0 %v218
    %254 = vmatprep.subr.mxu0 0.0
    %255 = vmatpush1.msra.mxu0 %v219
    %256 = vmatprep.subr.mxu0 0.0
    %257 = vmatpush1.msra.mxu0 %v220
    %258 = vmatprep.subr.mxu0 0.0
    %259 = vmatpush1.msra.mxu0 %v221
    %260 = vmatprep.subr.mxu0 0.0
    %261 = vmatpush1.msra.mxu0 %v222
    %262 = vmatprep.subr.mxu0 0.0
    %263 = vmatpush1.msra.mxu0 %v223
    %264 = vmatprep.subr.mxu0 0.0
    %265 = vmatpush1.msra.mxu0 %v224
    %266 = vmatprep.subr.mxu0 0.0
    %267 = vmatpush1.msra.mxu0 %v225
    %268 = vmatprep.subr.mxu0 0.0
    %269 = vmatpush1.msra.mxu0 %v226
    %270 = vmatprep.subr.mxu0 0.0
    %271 = vmatpush1.msra.mxu0 %v227
    %272 = vmatprep.subr.mxu0 0.0
    %273 = vmatpush1.msra.mxu0 %v228
    %274 = vmatprep.subr.mxu0 0.0
    %275 = vmatpush1.msra.mxu0 %v229
    %276 = vmatprep.subr.mxu0 0.0
    %277 = vmatpush1.msra.mxu0 %v230
    %278 = vmatprep.subr.mxu0 0.0
    %279 = vmatpush1.msra.mxu0 %v231
    %280 = vmatprep.subr.mxu0 0.0
    %281 = vmatpush1.msra.mxu0 %v232
    %282 = vmatprep.subr.mxu0 0.0
    %283 = vmatpush1.msra.mxu0 %v233
    %284 = vmatprep.subr.mxu0 0.0
    %285 = vmatpush1.msra.mxu0 %v234
    %286 = vmatprep.subr.mxu0 0.0
    %287 = vmatpush1.msra.mxu0 %v235
    %288 = vmatprep.subr.mxu0 0.0
    %289 = vmatpush1.msra.mxu0 %v236
    %290 = vmatprep.subr.mxu0 0.0
    %291 = vmatpush1.msra.mxu0 %v237
    %292 = vmatprep.subr.mxu0 0.0
    %293 = vmatpush1.msra.mxu0 %v238
    %294 = vmatprep.subr.mxu0 0.0
    %295 = vmatpush1.msra.mxu0 %v239
    %296 = vmatprep.subr.mxu0 0.0
    %297 = vmatpush1.msra.mxu0 %v240
    %298 = vmatprep.subr.mxu0 0.0
    %299 = vmatpush1.msra.mxu0 %v241
    %300 = vmatprep.subr.mxu0 0.0
    %301 = vmatpush1.msra.mxu0 %v242
    %302 = vmatprep.subr.mxu0 0.0
    %303 = vmatpush1.msra.mxu0 %v243
    %304 = vmatprep.subr.mxu0 0.0
    %305 = vmatpush1.msra.mxu0 %v244
    %306 = vmatprep.subr.mxu0 0.0
    %307 = vmatpush1.msra.mxu0 %v245
    %308 = vmatprep.subr.mxu0 0.0
    %309 = vmatpush1.msra.mxu0 %v246
    %310 = vmatprep.subr.mxu0 0.0
    %311 = vmatpush1.msra.mxu0 %v247
    %312 = vmatprep.mubr.f32.mxu0 %v215
    %313 = vmatmul.mubr.f32.gmra.mrb[0].mxu0 %v214
    %v314 = vpop.f32.mrb[0].mxu0
    %v315 = vadd.f32 0.0, %v314
    %v316 = vpop.f32.mrb[0].mxu0
    %317 = vdwg.mxu0
    %v318 = vrcp.pop %v137
    %v319 = vmul.f32 %v315, %v318
    %vm320 = vcmask 261120
    %321 = vst.msk [vmem:[#allocation3] sm:$0xff] %vm320, %v319
    // Predicated region
    $region22: #{tpu_custom_call.1} parent=1 // pred_check
      _
    $region23: #{tpu_custom_call.1} parent=1 // pred_check_branch
      %323 = sbr.rel (0) target = $region25
    $region24: #{tpu_custom_call.1} parent=1 // pred_region
      %s325 = ssub.s32 128, 128
      %326 = vsyncadd [#allocation4], %s325
      %s328 = sshll.u32 [#allocation3], 4
      %s329 = int_to_ptr.vmem [resolvable:$true] %s328
      %331 = dma.vmem_to_hbm [thread:$0]  %s329, 128, %s5, [#allocation4]
    $region25: #{tpu_custom_call.1} parent=1 // pred_fallthru
      _
    // Predicated region
    $region26: #{tpu_custom_call.1} parent=1 // pred_check
      _
    $region27: #{tpu_custom_call.1} parent=1 // pred_check_branch
      %333 = sbr.rel (0) target = $region29
    $region28: #{tpu_custom_call.1} parent=1 // pred_region
      %334 = dma.done [#allocation4], 128
    $region29: #{tpu_custom_call.1} parent=1 // pred_fallthru
      _
    %335 = vsyncpa [#allocation4], 1

</llo_original>
